<compile_context>
chip_gen: v5e
topology: v5e:2x2
jax: 0.10.0
libtpu: 0.0.40
codegen_flags: <defaults>
</compile_context>

<pallas_src>
import functools

import jax
import jax.numpy as jnp
from jax.experimental import pallas as pl
from jax.experimental.pallas import tpu as pltpu

LANE = 128
SUBLANE = 8


def _round_up(x, m):
    return (x + m - 1) // m * m


def mlp_probe_kernel(x_ref, w1_ref, b1_ref, w2_ref, b2_ref, o_ref):
    # Hidden layer: Linear (MXU, f32 accumulation) + bias + ReLU (VPU, f32).
    h = jnp.dot(x_ref[...], w1_ref[...], preferred_element_type=jnp.float32)
    h = jnp.maximum(h + b1_ref[...], 0.0)          # b1 kept in f32
    # Dropout(p) in eval mode == identity -> skipped.
    # Output layer: Linear straight into the narrow (n_classes-wide) output.
    out = jnp.dot(h.astype(w2_ref.dtype), w2_ref[...],
                  preferred_element_type=jnp.float32)
    out = out + b2_ref[...]                        # b2 kept in f32
    o_ref[...] = out.astype(o_ref.dtype)


@functools.partial(jax.jit, static_argnames=("tile_m", "compute_dtype"))
def mlp_probe_forward(x, w1, b1, w2, b2, *, tile_m=1024,
                      compute_dtype=jnp.bfloat16):
    batch, input_dim = x.shape
    hid_dim = w1.shape[1]
    n_classes = w2.shape[1]
    out_dtype = x.dtype

    # ---- Explicit compute dtype for the MXU path; biases/epilogue stay f32.
    x = x.astype(compute_dtype)
    w1 = w1.astype(compute_dtype)
    w2 = w2.astype(compute_dtype)
    b1 = b1.reshape(1, hid_dim).astype(jnp.float32)
    b2 = b2.reshape(1, n_classes).astype(jnp.float32)

    # ---- Batch tiling: large sublane-aligned tiles to amortize grid-step
    #      overhead, clamped so grid_m >= 2 when possible (v7x megacore gets
    #      both TensorCores working on the "parallel" axis).
    batch_sub = _round_up(batch, SUBLANE)
    tile_m_eff = min(tile_m, batch_sub)
    if batch_sub >= 2 * SUBLANE:
        tile_m_eff = min(tile_m_eff, _round_up(batch_sub // 2, SUBLANE))
    tile_m_eff = max(SUBLANE, _round_up(tile_m_eff, SUBLANE))
    batch_pad = _round_up(batch, tile_m_eff)
    if batch_pad != batch:
        x = jnp.pad(x, ((0, batch_pad - batch), (0, 0)))
    grid_m = batch_pad // tile_m_eff

    # ---- VMEM budget (streamed blocks double-buffered, constant-index_map
    #      weight/bias blocks single-buffered), capped under the 32 MiB
    #      scoped default and well inside v7x's 64 MiB per-TC VMEM.
    bpe_c = jnp.dtype(compute_dtype).itemsize
    bpe_o = jnp.dtype(out_dtype).itemsize
    per_step = 2 * tile_m_eff * (input_dim * bpe_c + n_classes * bpe_o)
    resident = (input_dim * hid_dim + hid_dim * n_classes) * bpe_c \
        + (hid_dim + n_classes) * 4
    scratch = tile_m_eff * hid_dim * 4              # f32 hidden activations
    vmem_limit = int(min(max(2 * (per_step + resident + scratch), 4 << 20),
                         32 << 20))

    flops = 2 * batch_pad * (input_dim * hid_dim + hid_dim * n_classes)
    bytes_accessed = int(
        batch_pad * input_dim * bpe_c
        + (input_dim * hid_dim + hid_dim * n_classes) * bpe_c
        + (hid_dim + n_classes) * 4
        + batch_pad * n_classes * bpe_o)

    out_padded = pl.pallas_call(
        mlp_probe_kernel,
        out_shape=jax.ShapeDtypeStruct((batch_pad, n_classes), out_dtype),
        grid_spec=pltpu.PrefetchScalarGridSpec(
            num_scalar_prefetch=0,
            grid=(grid_m,),
            in_specs=[
                pl.BlockSpec((tile_m_eff, input_dim), lambda i: (i, 0)),  # x: streamed
                pl.BlockSpec((input_dim, hid_dim), lambda i: (0, 0)),     # w1: resident
                pl.BlockSpec((1, hid_dim), lambda i: (0, 0)),             # b1: resident
                pl.BlockSpec((hid_dim, n_classes), lambda i: (0, 0)),     # w2: resident
                pl.BlockSpec((1, n_classes), lambda i: (0, 0)),           # b2: resident
            ],
            out_specs=pl.BlockSpec((tile_m_eff, n_classes), lambda i: (i, 0)),
        ),
        compiler_params=pltpu.CompilerParams(
            dimension_semantics=("parallel",),  # shards batch tiles across TCs on v7x
            vmem_limit_bytes=vmem_limit,
        ),
        cost_estimate=pl.CostEstimate(
            flops=flops, transcendentals=0, bytes_accessed=bytes_accessed),
    )(x, w1, b1, w2, b2)

    # Padded batch rows contain relu(b1)@w2+b2 garbage; slice them off here and
    # never reuse the padded slab downstream.
    return out_padded[:batch]


def init_linear_params(key, in_dim, out_dim, dtype=jnp.float32):
    """Deterministic init mimicking PyTorch nn.Linear default (uniform +/- 1/sqrt(in))."""
    k_w, k_b = jax.random.split(key)
    bound = 1.0 / jnp.sqrt(jnp.asarray(in_dim, dtype))
    # Stored as [in_dim, out_dim] so the kernel does X @ W.
    w = jax.random.uniform(k_w, (in_dim, out_dim), dtype, -bound, bound)
    b = jax.random.uniform(k_b, (1, out_dim), dtype, -bound, bound)
    return w, b


def _ref_forward(x, w1, b1, w2, b2):
    return jnp.maximum(x @ w1 + b1, 0.0) @ w2 + b2


if __name__ == "__main__":
    # Small shapes consistent with the module: MyModule(input_dim=32, n_hid=1,
    # hid_dim=128, n_classes=2) applied to a [batch, input_dim] activation matrix.
    batch, input_dim, hid_dim, n_classes = 8, 32, 128, 2

    key = jax.random.PRNGKey(0)
    k_x, k_l1, k_l2, k_big = jax.random.split(key, 4)

    x = jax.random.normal(k_x, (batch, input_dim), jnp.float32)
    w1, b1 = init_linear_params(k_l1, input_dim, hid_dim)
    w2, b2 = init_linear_params(k_l2, hid_dim, n_classes)
    ref = _ref_forward(x, w1, b1, w2, b2)

    # Tiny batch, f32 compute path: exact-ish against the f32 reference.
    out_f32 = jax.block_until_ready(
        mlp_probe_forward(x, w1, b1, w2, b2, compute_dtype=jnp.float32))
    assert out_f32.shape == (batch, n_classes)
    assert jnp.allclose(out_f32, ref, atol=1e-5, rtol=1e-5)

    # Tiny batch, default bf16 MXU path: looser tolerance vs f32 reference.
    out_bf16 = jax.block_until_ready(mlp_probe_forward(x, w1, b1, w2, b2))
    assert out_bf16.shape == (batch, n_classes)
    assert jnp.allclose(out_bf16, ref, atol=1e-1, rtol=1e-1)

    # Batched case exercising the grid (>=2 batch tiles so both v7x TCs get
    # work; weights stay VMEM-resident while x / out stream).
    big_batch = 512
    x_big = jax.random.normal(k_big, (big_batch, input_dim), jnp.float32)
    ref_big = _ref_forward(x_big, w1, b1, w2, b2)
    out_big = jax.block_until_ready(mlp_probe_forward(x_big, w1, b1, w2, b2))
    assert out_big.shape == (big_batch, n_classes)
    assert jnp.allclose(out_big, ref_big, atol=1e-1, rtol=1e-1)

    print("KERNEL_OK")
</pallas_src>

<mosaic_0001>
module attributes {stable_mosaic.version = 11 : i64} {
  func.func @mlp_probe_kernel(%arg0: i32, %arg1: memref<8x32xf32, #tpu.memory_space<vmem>>, %arg2: memref<32x128xf32, #tpu.memory_space<vmem>>, %arg3: memref<1x128xf32, #tpu.memory_space<vmem>>, %arg4: memref<128x2xf32, #tpu.memory_space<vmem>>, %arg5: memref<1x2xf32, #tpu.memory_space<vmem>>, %arg6: memref<8x2xf32, #tpu.memory_space<vmem>>) attributes {dimension_semantics = [#tpu.dimension_semantics<parallel>], iteration_bounds = array<i64: 1>, scalar_prefetch = 0 : i64, scratch_operands = 0 : i64, tpu.core_type = #tpu.core_type<tc>, window_params = [{transform_indices = @transform_0, window_bounds = array<i64: 8, 32>}, {pipeline_mode = #tpu.pipeline_mode<synchronous>, transform_indices = @transform_1, window_bounds = array<i64: 32, 128>}, {pipeline_mode = #tpu.pipeline_mode<synchronous>, transform_indices = @transform_2, window_bounds = array<i64: 1, 128>}, {pipeline_mode = #tpu.pipeline_mode<synchronous>, transform_indices = @transform_3, window_bounds = array<i64: 128, 2>}, {pipeline_mode = #tpu.pipeline_mode<synchronous>, transform_indices = @transform_4, window_bounds = array<i64: 1, 2>}, {transform_indices = @transform_5, window_bounds = array<i64: 8, 2>}]} {
    %c0 = arith.constant 0 : index
    %c0_0 = arith.constant 0 : index
    %0 = vector.load %arg1[%c0, %c0_0] : memref<8x32xf32, #tpu.memory_space<vmem>>, vector<8x32xf32>
    %c0_1 = arith.constant 0 : index
    %c0_2 = arith.constant 0 : index
    %1 = vector.load %arg2[%c0_1, %c0_2] : memref<32x128xf32, #tpu.memory_space<vmem>>, vector<32x128xf32>
    %cst = arith.constant dense<0.000000e+00> : vector<8x128xf32>
    %2 = tpu.matmul %0, %1, %cst {dimension_numbers = #tpu.dot_dimension_numbers<[1], [0], [0], [1], [0, 0, 1, 1], [], []>} : vector<8x32xf32>, vector<32x128xf32>, vector<8x128xf32> -> vector<8x128xf32>
    %c0_3 = arith.constant 0 : index
    %c0_4 = arith.constant 0 : index
    %3 = vector.load %arg3[%c0_3, %c0_4] : memref<1x128xf32, #tpu.memory_space<vmem>>, vector<1x128xf32>
    %4 = vector.broadcast %3 : vector<1x128xf32> to vector<8x128xf32>
    %5 = arith.addf %2, %4 : vector<8x128xf32>
    %cst_5 = arith.constant 0.000000e+00 : f32
    %6 = vector.broadcast %cst_5 : f32 to vector<8x128xf32>
    %7 = arith.maximumf %5, %6 : vector<8x128xf32>
    %c0_6 = arith.constant 0 : index
    %c0_7 = arith.constant 0 : index
    %8 = vector.load %arg4[%c0_6, %c0_7] : memref<128x2xf32, #tpu.memory_space<vmem>>, vector<128x2xf32>
    %cst_8 = arith.constant dense<0.000000e+00> : vector<8x2xf32>
    %9 = tpu.matmul %7, %8, %cst_8 {dimension_numbers = #tpu.dot_dimension_numbers<[1], [0], [0], [1], [0, 0, 1, 1], [], []>} : vector<8x128xf32>, vector<128x2xf32>, vector<8x2xf32> -> vector<8x2xf32>
    %c0_9 = arith.constant 0 : index
    %c0_10 = arith.constant 0 : index
    %10 = vector.load %arg5[%c0_9, %c0_10] : memref<1x2xf32, #tpu.memory_space<vmem>>, vector<1x2xf32>
    %11 = vector.broadcast %10 : vector<1x2xf32> to vector<8x2xf32>
    %12 = arith.addf %9, %11 : vector<8x2xf32>
    %c0_11 = arith.constant 0 : index
    %c0_12 = arith.constant 0 : index
    %13 = vector.load %arg6[%c0_11, %c0_12] : memref<8x2xf32, #tpu.memory_space<vmem>>, vector<8x2xf32>
    tpu.vector_store %arg6[%c0_11, %c0_12], %12 {strides = array<i32>} : memref<8x2xf32, #tpu.memory_space<vmem>>, vector<8x2xf32>,
    return
  }
  func.func @transform_0(%arg0: i32) -> (i32, i32) {
    %c0_i32 = arith.constant 0 : i32
    %c0_i32_0 = arith.constant 0 : i32
    return %arg0, %c0_i32 : i32, i32
  }
  func.func @transform_1(%arg0: i32) -> (i32, i32) {
    %c0_i32 = arith.constant 0 : i32
    %c0_i32_0 = arith.constant 0 : i32
    %c0_i32_1 = arith.constant 0 : i32
    return %c0_i32, %c0_i32_0 : i32, i32
  }
  func.func @transform_2(%arg0: i32) -> (i32, i32) {
    %c0_i32 = arith.constant 0 : i32
    %c0_i32_0 = arith.constant 0 : i32
    %c0_i32_1 = arith.constant 0 : i32
    return %c0_i32, %c0_i32_0 : i32, i32
  }
  func.func @transform_3(%arg0: i32) -> (i32, i32) {
    %c0_i32 = arith.constant 0 : i32
    %c0_i32_0 = arith.constant 0 : i32
    %c0_i32_1 = arith.constant 0 : i32
    return %c0_i32, %c0_i32_0 : i32, i32
  }
  func.func @transform_4(%arg0: i32) -> (i32, i32) {
    %c0_i32 = arith.constant 0 : i32
    %c0_i32_0 = arith.constant 0 : i32
    %c0_i32_1 = arith.constant 0 : i32
    return %c0_i32, %c0_i32_0 : i32, i32
  }
  func.func @transform_5(%arg0: i32) -> (i32, i32) {
    %c0_i32 = arith.constant 0 : i32
    %c0_i32_0 = arith.constant 0 : i32
    return %arg0, %c0_i32 : i32, i32
  }
}

</mosaic_0001>

<llo_original>
// kernel: mlp_probe_forward.1
$region0: #{mlp_probe_forward.1}
  #allocation0 [shape = 'u32[]', space=smem, size = 0x4, offset = 0x4, fixed_abs, tag = 'smem constant byte address 0x4 - core index']
  #allocation1 [shape = 'u32[72,128]{1,0:T(1,128)}', space=vmem, size = 0x9000, scoped, tag = 'internal scratch']
  %s0 = inlined_call_operand.vmem [shape: f32[8,32], index: 0, kind: input, shape index: {}]
  %s1 = inlined_call_operand.vmem [shape: f32[32,128], index: 1, kind: input, shape index: {}]
  %s2 = inlined_call_operand.vmem [shape: f32[1,128], index: 2, kind: input, shape index: {}]
  %s3 = inlined_call_operand.vmem [shape: f32[128,2], index: 3, kind: input, shape index: {}]
  %s4 = inlined_call_operand.vmem [shape: f32[1,2], index: 4, kind: input, shape index: {}]
  %s5 = inlined_call_operand.vmem [shape: f32[8,2], index: 5, kind: output, shape index: {}]
  %s6 = sld [smem:[#allocation0]]
  $region30: #{mlp_probe_forward.1} parent=0
    _
  %s8 = ssub.s32 1, %s6
  %s9 = scalar_select 0, %s8, %s6
  // Predicated region
  $region2: #{mlp_probe_forward.1} parent=0 // pred_check
    _
  $region3: #{mlp_probe_forward.1} parent=0 // pred_check_branch
    %11 = sbr.rel (0) target = $region5
  $region4: #{mlp_probe_forward.1} parent=0 // pred_region
    _
  $region5: #{mlp_probe_forward.1} parent=0 // pred_fallthru
    _
  // Predicated region
  $region6: #{mlp_probe_forward.1} parent=0 // pred_check
    _
  $region7: #{mlp_probe_forward.1} parent=0 // pred_check_branch
    %13 = sbr.rel (0) target = $region9
  $region8: #{mlp_probe_forward.1} parent=0 // pred_region
    _
  $region9: #{mlp_probe_forward.1} parent=0 // pred_fallthru
    _
  // Predicated region
  $region10: #{mlp_probe_forward.1} parent=0 // pred_check
    _
  $region11: #{mlp_probe_forward.1} parent=0 // pred_check_branch
    %15 = sbr.rel (0) target = $region13
  $region12: #{mlp_probe_forward.1} parent=0 // pred_region
    _
  $region13: #{mlp_probe_forward.1} parent=0 // pred_fallthru
    _
  // Predicated region
  $region14: #{mlp_probe_forward.1} parent=0 // pred_check
    _
  $region15: #{mlp_probe_forward.1} parent=0 // pred_check_branch
    %17 = sbr.rel (0) target = $region17
  $region16: #{mlp_probe_forward.1} parent=0 // pred_region
    _
  $region17: #{mlp_probe_forward.1} parent=0 // pred_fallthru
    _
  // Predicated region
  $region18: #{mlp_probe_forward.1} parent=0 // pred_check
    _
  $region19: #{mlp_probe_forward.1} parent=0 // pred_check_branch
    %19 = sbr.rel (0) target = $region21
  $region20: #{mlp_probe_forward.1} parent=0 // pred_region
    _
  $region21: #{mlp_probe_forward.1} parent=0 // pred_fallthru
    _
  %v20 = vld [vmem:[%s0] sm:$0xff]
  %v21 = vld [vmem:[%s1] sm:$0xff]
  %v22 = vld [vmem:[%s1 + $0x8] sm:$0xff]
  %v23 = vld [vmem:[%s1 + $0x10] sm:$0xff]
  %v24 = vld [vmem:[%s1 + $0x18] sm:$0xff]
  %v25 = vld [vmem:[%s2] sm:$0x1]
  %v27 = vperm.slane %v25, 0
  %vm29 = vcmask 261120
  %v31 = vsel %vm29, %v20, 0
  %33 = vmatpush.msra.mxu0 0.0
  %34 = vmatpush.msra.mxu0 0.0
  %35 = vmatpush.msra.mxu0 0.0
  %36 = vmatpush.msra.mxu0 0.0
  %37 = vmatpush.msra.mxu0 0.0
  %38 = vmatpush.msra.mxu0 0.0
  %39 = vmatpush.msra.mxu0 0.0
  %40 = vmatpush.msra.mxu0 0.0
  %41 = vmatpush.msra.mxu0 0.0
  %42 = vmatpush.msra.mxu0 0.0
  %43 = vmatpush.msra.mxu0 0.0
  %44 = vmatpush.msra.mxu0 0.0
  %45 = vmatpush.msra.mxu0 %v24
  %46 = vmatpush.msra.mxu0 %v23
  %47 = vmatpush.msra.mxu0 %v22
  %48 = vmatpush.msra.mxu0 %v21
  %49 = vmatmul.f32.gmra.mxu0 %v31
  %v50 = vpop.f32.mrf.mxu0
  %v51 = vadd.f32 %v27, %v50
  %52 = vdwg.mxu0
  %v53 = vmax.f32 %v51, 0.0
  %v54 = vld [vmem:[%s3] sm:$0xff]
  %v55 = vld [vmem:[%s3 + $0x8] sm:$0xff]
  %v56 = vld [vmem:[%s3 + $0x10] sm:$0xff]
  %v57 = vld [vmem:[%s3 + $0x18] sm:$0xff]
  %v58 = vld [vmem:[%s3 + $0x20] sm:$0xff]
  %v59 = vld [vmem:[%s3 + $0x28] sm:$0xff]
  %v60 = vld [vmem:[%s3 + $0x30] sm:$0xff]
  %v61 = vld [vmem:[%s3 + $0x38] sm:$0xff]
  %v62 = vld [vmem:[%s3 + $0x40] sm:$0xff]
  %v63 = vld [vmem:[%s3 + $0x48] sm:$0xff]
  %v64 = vld [vmem:[%s3 + $0x50] sm:$0xff]
  %v65 = vld [vmem:[%s3 + $0x58] sm:$0xff]
  %v66 = vld [vmem:[%s3 + $0x60] sm:$0xff]
  %v67 = vld [vmem:[%s3 + $0x68] sm:$0xff]
  %v68 = vld [vmem:[%s3 + $0x70] sm:$0xff]
  %v69 = vld [vmem:[%s3 + $0x78] sm:$0xff]
  %v70 = vld [vmem:[%s4] sm:$0x1]
  %v72 = vperm.slane %v70, 0
  %74 = vmatpush.msra.mxu0 %v69
  %75 = vmatpush.msra.mxu0 %v68
  %76 = vmatpush.msra.mxu0 %v67
  %77 = vmatpush.msra.mxu0 %v66
  %78 = vmatpush.msra.mxu0 %v65
  %79 = vmatpush.msra.mxu0 %v64
  %80 = vmatpush.msra.mxu0 %v63
  %81 = vmatpush.msra.mxu0 %v62
  %82 = vmatpush.msra.mxu0 %v61
  %83 = vmatpush.msra.mxu0 %v60
  %84 = vmatpush.msra.mxu0 %v59
  %85 = vmatpush.msra.mxu0 %v58
  %86 = vmatpush.msra.mxu0 %v57
  %87 = vmatpush.msra.mxu0 %v56
  %88 = vmatpush.msra.mxu0 %v55
  %89 = vmatpush.msra.mxu0 %v54
  %90 = vmatmul.f32.gmra.mxu0 %v53
  %v91 = vpop.f32.mrf.mxu0
  %v92 = vadd.f32 %v72, %v91
  %93 = vdwg.mxu0
  %vm94 = vcmask 15360
  %95 = vst.msk [vmem:[%s5] sm:$0xff] %vm94, %v92
  // Predicated region
  $region22: #{mlp_probe_forward.1} parent=0 // pred_check
    _
  $region23: #{mlp_probe_forward.1} parent=0 // pred_check_branch
    %97 = sbr.rel (0) target = $region25
  $region24: #{mlp_probe_forward.1} parent=0 // pred_region
    _
  $region25: #{mlp_probe_forward.1} parent=0 // pred_fallthru
    _
  // Predicated region
  $region26: #{mlp_probe_forward.1} parent=0 // pred_check
    _
  $region27: #{mlp_probe_forward.1} parent=0 // pred_check_branch
    %99 = sbr.rel (0) target = $region29
  $region28: #{mlp_probe_forward.1} parent=0 // pred_region
    _
  $region29: #{mlp_probe_forward.1} parent=0 // pred_fallthru
    _

</llo_original>
